<compile_context>
chip_gen: v7x
topology: tpu7x:2x2x1
jax: 0.10.0
libtpu: 0.0.40
codegen_flags: <defaults>
</compile_context>

<pallas_src>
import numpy as np
import jax
import jax.numpy as jnp
from jax.experimental import pallas as pl
from jax.experimental.pallas import tpu as pltpu

# ----------------------------- config (matches module __init__) --------------
NUM_NODES = 16          # graph size
NODE_FEAT = 8           # node_features.shape[1]
EMBED_DIM = 16          # embed_dim
HIDDEN = 32             # hidden_size
NUM_MU_LEVELS = 2       # num_mu_levels (forward uses only the first 2 convs)
NUM_HOPS = 2            # cmd_args.num_hops
INPUT_SIZE = 2 * EMBED_DIM + EMBED_DIM   # = 48
A_MAX = NUM_NODES       # static padded action count per state


# ----------------------------- fused Pallas kernel ----------------------------
def dqn_fused_kernel(a_ref, x_ref,
                     cw0_ref, cb0_ref, cw1_ref, cb1_ref,
                     prep_ref, trep_ref, asel_ref,
                     fw1_ref, fb1_ref, fw2_ref, fb2_ref,
                     o_ref):
    """One launch for the whole forward.

    GCN (2 layers, state independent)     : mu_v = A@(A@(X W0)+b0) W1 + b1
    gather-as-matmul (host-built tables)  : pooled / target / action embeds
    fc1 split by input block + ReLU       : h = relu(P@mu_v@W1p + T@mu_v@W1t
                                                     + A@mu_v@W1a + b1)
    fc2 as VPU lane-reduce                : q = sum(h * w2_row, -1) + b2
    """
    f32 = jnp.float32
    a_hat = a_ref[...]

    # ---- fused 2-layer GCN (computed once for all states) ----
    h0 = jnp.dot(a_hat,
                 jnp.dot(x_ref[...], cw0_ref[...], preferred_element_type=f32),
                 preferred_element_type=f32) + cb0_ref[...]
    mu_v = jnp.dot(a_hat,
                   jnp.dot(h0, cw1_ref[...], preferred_element_type=f32),
                   preferred_element_type=f32) + cb1_ref[...]          # (N, E)

    # ---- fc1 weight blocks (static, tile-aligned slices: 16/32/48 rows) ----
    E = EMBED_DIM
    w1_p = fw1_ref[0:E, :]            # acts on pooled b-hop embedding
    w1_t = fw1_ref[E:2 * E, :]        # acts on target-node embedding
    w1_a = fw1_ref[2 * E:3 * E, :]    # acts on action-node embedding

    k_p = jnp.dot(mu_v, w1_p, preferred_element_type=f32)              # (N, H)
    k_t = jnp.dot(mu_v, w1_t, preferred_element_type=f32)              # (N, H)
    k_a = jnp.dot(mu_v, w1_a, preferred_element_type=f32)              # (N, H)

    # ---- gather-as-matmul over all (state, action) rows at once ----
    h = (jnp.dot(prep_ref[...], k_p, preferred_element_type=f32)
         + jnp.dot(trep_ref[...], k_t, preferred_element_type=f32)
         + jnp.dot(asel_ref[...], k_a, preferred_element_type=f32)
         + fb1_ref[...])                                               # (S*A, H)
    h = jnp.maximum(h, 0.0)

    # ---- fc2: VPU row-reduce; scalar bias from SMEM ----
    q = jnp.sum(h * fw2_ref[...], axis=-1, keepdims=True) + fb2_ref[0, 0]
    o_ref[...] = q                                                     # (S*A, 1)


def _vmem_spec(shape):
    # single-block (no grid): block == full array
    return pl.BlockSpec(shape, lambda: tuple(0 for _ in shape))


def dqn_fused(a_hat, x, params, prep, trep, asel):
    """Single pallas_call for the whole DQN forward (all states batched)."""
    s_a = prep.shape[0]                       # S * A_MAX rows
    cw0, cb0 = params["convs"][0]
    cw1, cb1 = params["convs"][1]
    fw1, fb1 = params["w1"], params["b1"]
    fw2 = params["w2"].reshape(1, HIDDEN)     # row layout for the VPU reduce
    fb2 = params["b2"]                        # (1,1) scalar -> SMEM

    prep = jnp.asarray(prep, jnp.float32)
    trep = jnp.asarray(trep, jnp.float32)
    asel = jnp.asarray(asel, jnp.float32)

    return pl.pallas_call(
        dqn_fused_kernel,
        out_shape=jax.ShapeDtypeStruct((s_a, 1), jnp.float32),
        in_specs=[
            _vmem_spec(a_hat.shape),
            _vmem_spec(x.shape),
            _vmem_spec(cw0.shape), _vmem_spec(cb0.shape),
            _vmem_spec(cw1.shape), _vmem_spec(cb1.shape),
            _vmem_spec(prep.shape), _vmem_spec(trep.shape), _vmem_spec(asel.shape),
            _vmem_spec(fw1.shape), _vmem_spec(fb1.shape),
            _vmem_spec(fw2.shape),
            pl.BlockSpec(memory_space=pltpu.MemorySpace.SMEM),   # fc2 bias scalar
        ],
        out_specs=_vmem_spec((s_a, 1)),
    )(a_hat, x, cw0, cb0, cw1, cb1, prep, trep, asel, fw1, fb1, fw2, fb2)


# ----------------------------- graph glue (numpy, host) -----------------------
def build_graph(n):
    """Small deterministic undirected graph: ring + a few chords."""
    edges = [(i, (i + 1) % n) for i in range(n)]
    edges += [(0, n // 2), (1, n // 2 + 3), (2, n - 3)]
    src, dst = [], []
    for (u, v) in edges:
        src += [u, v]
        dst += [v, u]
    ei = np.stack([np.array(src, np.int64), np.array(dst, np.int64)])
    order = np.argsort(ei[0], kind="stable")
    return ei[:, order]


def gcn_norm_adj(edge_index, n):
    """D^-1/2 (A + I) D^-1/2 — the GCNConv propagation matrix."""
    a = np.zeros((n, n), np.float32)
    a[edge_index[0], edge_index[1]] = 1.0
    a = a + np.eye(n, dtype=np.float32)
    d = a.sum(1)
    dinv = 1.0 / np.sqrt(np.maximum(d, 1e-12))
    return (a * dinv[:, None]) * dinv[None, :]


def bhop_nbrs_np(edge_index, node, b, include_direct=True):
    src, dst = edge_index
    nodes = np.array([node], dtype=np.int64)
    neighbors = np.array([], dtype=np.int64)
    for i in range(b):
        if nodes.size == 0:
            break
        nodes1 = np.concatenate([dst[src == n] for n in nodes])
        nodes2 = np.concatenate([src[dst == n] for n in nodes])
        nodes = np.concatenate((nodes1, nodes2)).astype(np.int64)
        if include_direct or i > 0:
            neighbors = np.concatenate((neighbors, nodes))
    return neighbors


def get_all_actions_np(num_nodes, t, sol_set):
    mask = np.ones(num_nodes, dtype=bool)
    mask[t] = False
    for j in range(sol_set.shape[0]):
        e = sol_set[j]
        v = e[0] if e[1] == t else e[1]
        mask[v] = False
    return np.where(mask)[0].astype(np.int64)


def build_state_tables(edge_index, states, num_nodes, a_max):
    """Per-state gathers as dense selection matrices (host-built, tiny).

    P_rep  (S*A_max, N): duplicate-weighted mean over the b-hop region
                         (matches mean over region with repeats; empty -> 0,
                          matching the pooled NaN->0 fixup).
    T_rep  (S*A_max, N): one-hot row for the target node.
    A_sel  (S*A_max, N): sign(action) * one-hot(|action|); padded rows zero.
                         (sign(0)==0 matches torch.sign in the reference.)
    """
    s = len(states)
    pool = np.zeros((s, num_nodes), np.float32)
    tgt = np.zeros((s, num_nodes), np.float32)
    asel = np.zeros((s * a_max, num_nodes), np.float32)
    counts = []
    for si, (t, sol_set) in enumerate(states):
        region = bhop_nbrs_np(edge_index, t, NUM_HOPS)
        if region.size > 0:
            idx, cnt = np.unique(region, return_counts=True)
            pool[si, idx] = cnt.astype(np.float32) / float(region.size)
        tgt[si, t] = 1.0
        acts = get_all_actions_np(num_nodes, t, sol_set)
        counts.append(int(acts.shape[0]))
        for ai, a in enumerate(acts):
            asel[si * a_max + ai, abs(int(a))] = float(np.sign(a))
    prep = np.repeat(pool, a_max, axis=0)   # replicate per-state rows per action
    trep = np.repeat(tgt, a_max, axis=0)
    return prep, trep, asel, counts


# ----------------------------- DQN forward ------------------------------------
def dqn_forward(params, a_hat, edge_index, node_features, states):
    """states: list of (target_node, sol_set[k,2]).  actions=None branch."""
    # TODO(synk): perturb_graph is an external, unspecified op; orig_graph is
    # used directly here (sol_set only affects action masking).
    prep, trep, asel, counts = build_state_tables(
        edge_index, states, NUM_NODES, A_MAX)
    q_all = dqn_fused(a_hat, node_features, params, prep, trep, asel)
    list_q = []
    for si in range(len(states)):
        list_q.append(q_all[si * A_MAX: si * A_MAX + counts[si], :])
    return None, list_q


# ----------------------------- params -----------------------------------------
def init_params(key):
    ks = jax.random.split(key, 8)
    convs = []
    dims = [(NODE_FEAT, EMBED_DIM), (EMBED_DIM, EMBED_DIM), (EMBED_DIM, EMBED_DIM)]
    for i, (fi, fo) in enumerate(dims):   # 1 + num_mu_levels conv layers
        w = jax.random.normal(ks[i], (fi, fo), jnp.float32) / np.sqrt(fi)
        b = jax.random.normal(ks[i + 3], (1, fo), jnp.float32) * 0.01
        convs.append((w, b))
    w1 = jax.random.normal(ks[6], (INPUT_SIZE, HIDDEN), jnp.float32) / np.sqrt(INPUT_SIZE)
    b1 = jnp.zeros((1, HIDDEN), jnp.float32)
    w2 = jax.random.normal(ks[7], (HIDDEN, 1), jnp.float32) / np.sqrt(HIDDEN)
    b2 = jnp.zeros((1, 1), jnp.float32)
    return {"convs": convs, "w1": w1, "b1": b1, "w2": w2, "b2": b2}


# ----------------------------- main --------------------------------------------
if __name__ == "__main__":
    key = jax.random.PRNGKey(0)
    params = init_params(key)

    edge_index = build_graph(NUM_NODES)
    a_hat = jnp.asarray(gcn_norm_adj(edge_index, NUM_NODES))

    node_features = jax.random.normal(
        jax.random.fold_in(key, 123), (NUM_NODES, NODE_FEAT), jnp.float32
    )

    # two states: (target_node, current solution-set edges)
    states = [
        (3, np.array([[3, 7]], dtype=np.int64)),
        (10, np.array([[10, 2], [5, 10]], dtype=np.int64)),
    ]

    _, list_q = dqn_forward(params, a_hat, edge_index, node_features, states)
    for q in list_q:
        jax.block_until_ready(q)

    assert list_q[0].shape == (NUM_NODES - 2, 1)   # target + 1 blocked node
    assert list_q[1].shape == (NUM_NODES - 3, 1)   # target + 2 blocked nodes
    assert all(bool(jnp.all(jnp.isfinite(q))) for q in list_q)
    print("KERNEL_OK")
</pallas_src>

<mosaic_0001>
module attributes {stable_mosaic.version = 11 : i64} {
  func.func @dqn_fused_kernel(%arg0: memref<16x16xf32, #tpu.memory_space<vmem>>, %arg1: memref<16x8xf32, #tpu.memory_space<vmem>>, %arg2: memref<8x16xf32, #tpu.memory_space<vmem>>, %arg3: memref<1x16xf32, #tpu.memory_space<vmem>>, %arg4: memref<16x16xf32, #tpu.memory_space<vmem>>, %arg5: memref<1x16xf32, #tpu.memory_space<vmem>>, %arg6: memref<32x16xf32, #tpu.memory_space<vmem>>, %arg7: memref<32x16xf32, #tpu.memory_space<vmem>>, %arg8: memref<32x16xf32, #tpu.memory_space<vmem>>, %arg9: memref<48x32xf32, #tpu.memory_space<vmem>>, %arg10: memref<1x32xf32, #tpu.memory_space<vmem>>, %arg11: memref<1x32xf32, #tpu.memory_space<vmem>>, %arg12: memref<1x1xf32, #tpu.memory_space<smem>>, %arg13: memref<32x1xf32, #tpu.memory_space<vmem>>) attributes {dimension_semantics = [], scalar_prefetch = 0 : i64, scratch_operands = 0 : i64, tpu.core_type = #tpu.core_type<tc>} {
    %c0 = arith.constant 0 : index
    %c0_0 = arith.constant 0 : index
    %0 = vector.load %arg0[%c0, %c0_0] : memref<16x16xf32, #tpu.memory_space<vmem>>, vector<16x16xf32>
    %c0_1 = arith.constant 0 : index
    %c0_2 = arith.constant 0 : index
    %1 = vector.load %arg1[%c0_1, %c0_2] : memref<16x8xf32, #tpu.memory_space<vmem>>, vector<16x8xf32>
    %c0_3 = arith.constant 0 : index
    %c0_4 = arith.constant 0 : index
    %2 = vector.load %arg2[%c0_3, %c0_4] : memref<8x16xf32, #tpu.memory_space<vmem>>, vector<8x16xf32>
    %cst = arith.constant dense<0.000000e+00> : vector<16x16xf32>
    %3 = tpu.matmul %1, %2, %cst {dimension_numbers = #tpu.dot_dimension_numbers<[1], [0], [0], [1], [0, 0, 1, 1], [], []>} : vector<16x8xf32>, vector<8x16xf32>, vector<16x16xf32> -> vector<16x16xf32>
    %cst_5 = arith.constant dense<0.000000e+00> : vector<16x16xf32>
    %4 = tpu.matmul %0, %3, %cst_5 {dimension_numbers = #tpu.dot_dimension_numbers<[1], [0], [0], [1], [0, 0, 1, 1], [], []>} : vector<16x16xf32>, vector<16x16xf32>, vector<16x16xf32> -> vector<16x16xf32>
    %c0_6 = arith.constant 0 : index
    %c0_7 = arith.constant 0 : index
    %5 = vector.load %arg3[%c0_6, %c0_7] : memref<1x16xf32, #tpu.memory_space<vmem>>, vector<1x16xf32>
    %6 = vector.broadcast %5 : vector<1x16xf32> to vector<16x16xf32>
    %7 = arith.addf %4, %6 : vector<16x16xf32>
    %c0_8 = arith.constant 0 : index
    %c0_9 = arith.constant 0 : index
    %8 = vector.load %arg4[%c0_8, %c0_9] : memref<16x16xf32, #tpu.memory_space<vmem>>, vector<16x16xf32>
    %cst_10 = arith.constant dense<0.000000e+00> : vector<16x16xf32>
    %9 = tpu.matmul %7, %8, %cst_10 {dimension_numbers = #tpu.dot_dimension_numbers<[1], [0], [0], [1], [0, 0, 1, 1], [], []>} : vector<16x16xf32>, vector<16x16xf32>, vector<16x16xf32> -> vector<16x16xf32>
    %cst_11 = arith.constant dense<0.000000e+00> : vector<16x16xf32>
    %10 = tpu.matmul %0, %9, %cst_11 {dimension_numbers = #tpu.dot_dimension_numbers<[1], [0], [0], [1], [0, 0, 1, 1], [], []>} : vector<16x16xf32>, vector<16x16xf32>, vector<16x16xf32> -> vector<16x16xf32>
    %c0_12 = arith.constant 0 : index
    %c0_13 = arith.constant 0 : index
    %11 = vector.load %arg5[%c0_12, %c0_13] : memref<1x16xf32, #tpu.memory_space<vmem>>, vector<1x16xf32>
    %12 = vector.broadcast %11 : vector<1x16xf32> to vector<16x16xf32>
    %13 = arith.addf %10, %12 : vector<16x16xf32>
    %c0_14 = arith.constant 0 : index
    %c0_15 = arith.constant 0 : index
    %14 = vector.load %arg9[%c0_14, %c0_15] : memref<48x32xf32, #tpu.memory_space<vmem>>, vector<16x32xf32>
    %c16 = arith.constant 16 : index
    %c0_16 = arith.constant 0 : index
    %15 = vector.load %arg9[%c16, %c0_16] : memref<48x32xf32, #tpu.memory_space<vmem>>, vector<16x32xf32>
    %c32 = arith.constant 32 : index
    %c0_17 = arith.constant 0 : index
    %16 = vector.load %arg9[%c32, %c0_17] : memref<48x32xf32, #tpu.memory_space<vmem>>, vector<16x32xf32>
    %cst_18 = arith.constant dense<0.000000e+00> : vector<16x32xf32>
    %17 = tpu.matmul %13, %14, %cst_18 {dimension_numbers = #tpu.dot_dimension_numbers<[1], [0], [0], [1], [0, 0, 1, 1], [], []>} : vector<16x16xf32>, vector<16x32xf32>, vector<16x32xf32> -> vector<16x32xf32>
    %cst_19 = arith.constant dense<0.000000e+00> : vector<16x32xf32>
    %18 = tpu.matmul %13, %15, %cst_19 {dimension_numbers = #tpu.dot_dimension_numbers<[1], [0], [0], [1], [0, 0, 1, 1], [], []>} : vector<16x16xf32>, vector<16x32xf32>, vector<16x32xf32> -> vector<16x32xf32>
    %cst_20 = arith.constant dense<0.000000e+00> : vector<16x32xf32>
    %19 = tpu.matmul %13, %16, %cst_20 {dimension_numbers = #tpu.dot_dimension_numbers<[1], [0], [0], [1], [0, 0, 1, 1], [], []>} : vector<16x16xf32>, vector<16x32xf32>, vector<16x32xf32> -> vector<16x32xf32>
    %c0_21 = arith.constant 0 : index
    %c0_22 = arith.constant 0 : index
    %20 = vector.load %arg6[%c0_21, %c0_22] : memref<32x16xf32, #tpu.memory_space<vmem>>, vector<32x16xf32>
    %cst_23 = arith.constant dense<0.000000e+00> : vector<32x32xf32>
    %21 = tpu.matmul %20, %17, %cst_23 {dimension_numbers = #tpu.dot_dimension_numbers<[1], [0], [0], [1], [0, 0, 1, 1], [], []>} : vector<32x16xf32>, vector<16x32xf32>, vector<32x32xf32> -> vector<32x32xf32>
    %c0_24 = arith.constant 0 : index
    %c0_25 = arith.constant 0 : index
    %22 = vector.load %arg7[%c0_24, %c0_25] : memref<32x16xf32, #tpu.memory_space<vmem>>, vector<32x16xf32>
    %cst_26 = arith.constant dense<0.000000e+00> : vector<32x32xf32>
    %23 = tpu.matmul %22, %18, %cst_26 {dimension_numbers = #tpu.dot_dimension_numbers<[1], [0], [0], [1], [0, 0, 1, 1], [], []>} : vector<32x16xf32>, vector<16x32xf32>, vector<32x32xf32> -> vector<32x32xf32>
    %24 = arith.addf %21, %23 : vector<32x32xf32>
    %c0_27 = arith.constant 0 : index
    %c0_28 = arith.constant 0 : index
    %25 = vector.load %arg8[%c0_27, %c0_28] : memref<32x16xf32, #tpu.memory_space<vmem>>, vector<32x16xf32>
    %cst_29 = arith.constant dense<0.000000e+00> : vector<32x32xf32>
    %26 = tpu.matmul %25, %19, %cst_29 {dimension_numbers = #tpu.dot_dimension_numbers<[1], [0], [0], [1], [0, 0, 1, 1], [], []>} : vector<32x16xf32>, vector<16x32xf32>, vector<32x32xf32> -> vector<32x32xf32>
    %27 = arith.addf %24, %26 : vector<32x32xf32>
    %c0_30 = arith.constant 0 : index
    %c0_31 = arith.constant 0 : index
    %28 = vector.load %arg10[%c0_30, %c0_31] : memref<1x32xf32, #tpu.memory_space<vmem>>, vector<1x32xf32>
    %29 = vector.broadcast %28 : vector<1x32xf32> to vector<32x32xf32>
    %30 = arith.addf %27, %29 : vector<32x32xf32>
    %cst_32 = arith.constant 0.000000e+00 : f32
    %31 = vector.broadcast %cst_32 : f32 to vector<32x32xf32>
    %32 = arith.maximumf %30, %31 : vector<32x32xf32>
    %c0_33 = arith.constant 0 : index
    %c0_34 = arith.constant 0 : index
    %33 = vector.load %arg11[%c0_33, %c0_34] : memref<1x32xf32, #tpu.memory_space<vmem>>, vector<1x32xf32>
    %34 = vector.broadcast %33 : vector<1x32xf32> to vector<32x32xf32>
    %35 = arith.mulf %32, %34 : vector<32x32xf32>
    %cst_35 = arith.constant dense<0.000000e+00> : vector<32xf32>
    %36 = vector.multi_reduction <add>, %35, %cst_35 [1] : vector<32x32xf32> to vector<32xf32>
    %37 = vector.shape_cast %36 : vector<32xf32> to vector<32x1xf32>
    %c0_36 = arith.constant 0 : index
    %c0_37 = arith.constant 0 : index
    %38 = memref.load %arg12[%c0_36, %c0_37] : memref<1x1xf32, #tpu.memory_space<smem>>
    %39 = vector.broadcast %38 : f32 to vector<32x1xf32>
    %40 = arith.addf %37, %39 : vector<32x1xf32>
    %c0_38 = arith.constant 0 : index
    %c0_39 = arith.constant 0 : index
    %41 = vector.load %arg13[%c0_38, %c0_39] : memref<32x1xf32, #tpu.memory_space<vmem>>, vector<32x1xf32>
    tpu.vector_store %arg13[%c0_38, %c0_39], %40 {strides = array<i32>} : memref<32x1xf32, #tpu.memory_space<vmem>>, vector<32x1xf32>,
    return
  }
}

</mosaic_0001>

<llo_original>
// kernel: tpu_custom_call.1
$region0: #{tpu_custom_call.1}
  #allocation0 [shape = 'u32[]', space=smem, size = 0x4, offset = 0x4, fixed_abs, tag = 'smem constant byte address 0x4 - core index']
  #allocation1 [shape = 'u32[144,128]{1,0:T(1,128)}', space=vmem, size = 0x12000, scoped, tag = 'internal scratch']
  #allocation2 [shape = 'f32[1,1]{1,0:T(1,128)S(6)}', space=smem, size = 0x200, scoped, tag = 'scoped memory for tpu_custom_call.1']
  %s0 = inlined_call_operand.vmem [shape: f32[16,16], index: 0, kind: input, shape index: {}]
  %s1 = inlined_call_operand.vmem [shape: f32[16,8], index: 1, kind: input, shape index: {}]
  %s2 = inlined_call_operand.vmem [shape: f32[8,16], index: 2, kind: input, shape index: {}]
  %s3 = inlined_call_operand.vmem [shape: f32[1,16], index: 3, kind: input, shape index: {}]
  %s4 = inlined_call_operand.vmem [shape: f32[16,16], index: 4, kind: input, shape index: {}]
  %s5 = inlined_call_operand.vmem [shape: f32[1,16], index: 5, kind: input, shape index: {}]
  %s6 = inlined_call_operand.vmem [shape: f32[32,16], index: 6, kind: input, shape index: {}]
  %s7 = inlined_call_operand.vmem [shape: f32[32,16], index: 7, kind: input, shape index: {}]
  %s8 = inlined_call_operand.vmem [shape: f32[32,16], index: 8, kind: input, shape index: {}]
  %s9 = inlined_call_operand.vmem [shape: f32[48,32], index: 9, kind: input, shape index: {}]
  %s10 = inlined_call_operand.vmem [shape: f32[1,32], index: 10, kind: input, shape index: {}]
  %s11 = inlined_call_operand.vmem [shape: f32[1,32], index: 11, kind: input, shape index: {}]
  %s12 = inlined_call_operand.<no memory space> [shape: f32[1,1], index: 12, kind: input, shape index: {}]
  %s13 = inlined_call_operand.vmem [shape: f32[32,1], index: 13, kind: output, shape index: {}]
  %s14 = sld [smem:[#allocation0]]
  $region62: #{tpu_custom_call.1} parent=0
    _
  %s16 = ssub.s32 1, %s14
  %s17 = scalar_select 0, %s16, %s14
  %18 = sst [smem:[#allocation2]] %s12
  // Predicated region
  $region2: #{tpu_custom_call.1} parent=0 // pred_check
    _
  $region3: #{tpu_custom_call.1} parent=0 // pred_check_branch
    %20 = sbr.rel (0) target = $region5
  $region4: #{tpu_custom_call.1} parent=0 // pred_region
    _
  $region5: #{tpu_custom_call.1} parent=0 // pred_fallthru
    _
  // Predicated region
  $region6: #{tpu_custom_call.1} parent=0 // pred_check
    _
  $region7: #{tpu_custom_call.1} parent=0 // pred_check_branch
    %22 = sbr.rel (0) target = $region9
  $region8: #{tpu_custom_call.1} parent=0 // pred_region
    _
  $region9: #{tpu_custom_call.1} parent=0 // pred_fallthru
    _
  // Predicated region
  $region10: #{tpu_custom_call.1} parent=0 // pred_check
    _
  $region11: #{tpu_custom_call.1} parent=0 // pred_check_branch
    %24 = sbr.rel (0) target = $region13
  $region12: #{tpu_custom_call.1} parent=0 // pred_region
    _
  $region13: #{tpu_custom_call.1} parent=0 // pred_fallthru
    _
  // Predicated region
  $region14: #{tpu_custom_call.1} parent=0 // pred_check
    _
  $region15: #{tpu_custom_call.1} parent=0 // pred_check_branch
    %26 = sbr.rel (0) target = $region17
  $region16: #{tpu_custom_call.1} parent=0 // pred_region
    _
  $region17: #{tpu_custom_call.1} parent=0 // pred_fallthru
    _
  // Predicated region
  $region18: #{tpu_custom_call.1} parent=0 // pred_check
    _
  $region19: #{tpu_custom_call.1} parent=0 // pred_check_branch
    %28 = sbr.rel (0) target = $region21
  $region20: #{tpu_custom_call.1} parent=0 // pred_region
    _
  $region21: #{tpu_custom_call.1} parent=0 // pred_fallthru
    _
  // Predicated region
  $region22: #{tpu_custom_call.1} parent=0 // pred_check
    _
  $region23: #{tpu_custom_call.1} parent=0 // pred_check_branch
    %30 = sbr.rel (0) target = $region25
  $region24: #{tpu_custom_call.1} parent=0 // pred_region
    _
  $region25: #{tpu_custom_call.1} parent=0 // pred_fallthru
    _
  // Predicated region
  $region26: #{tpu_custom_call.1} parent=0 // pred_check
    _
  $region27: #{tpu_custom_call.1} parent=0 // pred_check_branch
    %32 = sbr.rel (0) target = $region29
  $region28: #{tpu_custom_call.1} parent=0 // pred_region
    _
  $region29: #{tpu_custom_call.1} parent=0 // pred_fallthru
    _
  // Predicated region
  $region30: #{tpu_custom_call.1} parent=0 // pred_check
    _
  $region31: #{tpu_custom_call.1} parent=0 // pred_check_branch
    %34 = sbr.rel (0) target = $region33
  $region32: #{tpu_custom_call.1} parent=0 // pred_region
    _
  $region33: #{tpu_custom_call.1} parent=0 // pred_fallthru
    _
  // Predicated region
  $region34: #{tpu_custom_call.1} parent=0 // pred_check
    _
  $region35: #{tpu_custom_call.1} parent=0 // pred_check_branch
    %36 = sbr.rel (0) target = $region37
  $region36: #{tpu_custom_call.1} parent=0 // pred_region
    _
  $region37: #{tpu_custom_call.1} parent=0 // pred_fallthru
    _
  // Predicated region
  $region38: #{tpu_custom_call.1} parent=0 // pred_check
    _
  $region39: #{tpu_custom_call.1} parent=0 // pred_check_branch
    %38 = sbr.rel (0) target = $region41
  $region40: #{tpu_custom_call.1} parent=0 // pred_region
    _
  $region41: #{tpu_custom_call.1} parent=0 // pred_fallthru
    _
  // Predicated region
  $region42: #{tpu_custom_call.1} parent=0 // pred_check
    _
  $region43: #{tpu_custom_call.1} parent=0 // pred_check_branch
    %40 = sbr.rel (0) target = $region45
  $region44: #{tpu_custom_call.1} parent=0 // pred_region
    _
  $region45: #{tpu_custom_call.1} parent=0 // pred_fallthru
    _
  // Predicated region
  $region46: #{tpu_custom_call.1} parent=0 // pred_check
    _
  $region47: #{tpu_custom_call.1} parent=0 // pred_check_branch
    %42 = sbr.rel (0) target = $region49
  $region48: #{tpu_custom_call.1} parent=0 // pred_region
    _
  $region49: #{tpu_custom_call.1} parent=0 // pred_fallthru
    _
  // Predicated region
  $region50: #{tpu_custom_call.1} parent=0 // pred_check
    _
  $region51: #{tpu_custom_call.1} parent=0 // pred_check_branch
    %44 = sbr.rel (0) target = $region53
  $region52: #{tpu_custom_call.1} parent=0 // pred_region
    _
  $region53: #{tpu_custom_call.1} parent=0 // pred_fallthru
    _
  %v45 = vld [vmem:[%s0] sm:$0xff]
  %v46 = vld [vmem:[%s0 + $0x8] sm:$0xff]
  %v47 = vld [vmem:[%s1] sm:$0xff]
  %v48 = vld [vmem:[%s1 + $0x8] sm:$0xff]
  %v49 = vld [vmem:[%s2] sm:$0xff]
  %vm50 = vcmask 64512
  %v52 = vsel %vm50, %v47, 0
  %v55 = vsel %vm50, %v48, 0
  %57 = vmatprep.subr.mxu0 0.0
  %58 = vmatpush1.msra.mxu0 %v49
  %59 = vmatprep.subr.mxu0 0.0
  %60 = vmatpush1.msra.mxu0 0.0
  %61 = vmatprep.subr.mxu0 0.0
  %62 = vmatpush1.msra.mxu0 0.0
  %63 = vmatprep.subr.mxu0 0.0
  %64 = vmatpush1.msra.mxu0 0.0
  %65 = vmatprep.subr.mxu0 0.0
  %66 = vmatpush1.msra.mxu0 0.0
  %67 = vmatprep.subr.mxu0 0.0
  %68 = vmatpush1.msra.mxu0 0.0
  %69 = vmatprep.subr.mxu0 0.0
  %70 = vmatpush1.msra.mxu0 0.0
  %71 = vmatprep.subr.mxu0 0.0
  %72 = vmatpush1.msra.mxu0 0.0
  %73 = vmatprep.subr.mxu0 0.0
  %74 = vmatpush1.msra.mxu0 0.0
  %75 = vmatprep.subr.mxu0 0.0
  %76 = vmatpush1.msra.mxu0 0.0
  %77 = vmatprep.subr.mxu0 0.0
  %78 = vmatpush1.msra.mxu0 0.0
  %79 = vmatprep.subr.mxu0 0.0
  %80 = vmatpush1.msra.mxu0 0.0
  %81 = vmatprep.subr.mxu0 0.0
  %82 = vmatpush1.msra.mxu0 0.0
  %83 = vmatprep.subr.mxu0 0.0
  %84 = vmatpush1.msra.mxu0 0.0
  %85 = vmatprep.subr.mxu0 0.0
  %86 = vmatpush1.msra.mxu0 0.0
  %87 = vmatprep.subr.mxu0 0.0
  %88 = vmatpush1.msra.mxu0 0.0
  %89 = vmatprep.subr.mxu0 0.0
  %90 = vmatpush1.msra.mxu0 0.0
  %91 = vmatprep.subr.mxu0 0.0
  %92 = vmatpush1.msra.mxu0 0.0
  %93 = vmatprep.subr.mxu0 0.0
  %94 = vmatpush1.msra.mxu0 0.0
  %95 = vmatprep.subr.mxu0 0.0
  %96 = vmatpush1.msra.mxu0 0.0
  %97 = vmatprep.subr.mxu0 0.0
  %98 = vmatpush1.msra.mxu0 0.0
  %99 = vmatprep.subr.mxu0 0.0
  %100 = vmatpush1.msra.mxu0 0.0
  %101 = vmatprep.subr.mxu0 0.0
  %102 = vmatpush1.msra.mxu0 0.0
  %103 = vmatprep.subr.mxu0 0.0
  %104 = vmatpush1.msra.mxu0 0.0
  %105 = vmatprep.subr.mxu0 0.0
  %106 = vmatpush1.msra.mxu0 0.0
  %107 = vmatprep.subr.mxu0 0.0
  %108 = vmatpush1.msra.mxu0 0.0
  %109 = vmatprep.subr.mxu0 0.0
  %110 = vmatpush1.msra.mxu0 0.0
  %111 = vmatprep.subr.mxu0 0.0
  %112 = vmatpush1.msra.mxu0 0.0
  %113 = vmatprep.subr.mxu0 0.0
  %114 = vmatpush1.msra.mxu0 0.0
  %115 = vmatprep.subr.mxu0 0.0
  %116 = vmatpush1.msra.mxu0 0.0
  %117 = vmatprep.subr.mxu0 0.0
  %118 = vmatpush1.msra.mxu0 0.0
  %119 = vmatprep.subr.mxu0 0.0
  %120 = vmatpush1.msra.mxu0 0.0
  %121 = vmatprep.mubr.f32.mxu0 0.0
  %122 = vmatmul.mubr.f32.gmra.mrb[0].mxu0 %v52
  %v123 = vpop.f32.mrb[0].mxu0
  %v124 = vadd.f32 0.0, %v123
  %v125 = vpop.f32.mrb[0].mxu0
  %126 = vmatprep.mubr.f32.mxu0 0.0
  %127 = vmatmul.mubr.f32.gmra.mrb[0].mxu0 %v55
  %v128 = vpop.f32.mrb[0].mxu0
  %v129 = vadd.f32 0.0, %v128
  %v130 = vpop.f32.mrb[0].mxu0
  %131 = vdwg.mxu0
  %v132 = vld [vmem:[%s3] sm:$0x1]
  %v134 = vlaneseq
  %v135 = vshrl.u32 %v134, 7
  %v136 = vsub.s32 0, %v135
  %v137 = vrot.slane %v132, %v136
  %vm139 = vcmask 130048
  %v141 = vsel %vm139, %v45, 0
  %v144 = vsel %vm139, %v46, 0
  %146 = vmatprep.subr.mxu0 0.0
  %147 = vmatpush1.msra.mxu0 %v124
  %148 = vmatprep.subr.mxu0 0.0
  %149 = vmatpush1.msra.mxu0 %v129
  %150 = vmatprep.subr.mxu0 0.0
  %151 = vmatpush1.msra.mxu0 0.0
  %152 = vmatprep.subr.mxu0 0.0
  %153 = vmatpush1.msra.mxu0 0.0
  %154 = vmatprep.subr.mxu0 0.0
  %155 = vmatpush1.msra.mxu0 0.0
  %156 = vmatprep.subr.mxu0 0.0
  %157 = vmatpush1.msra.mxu0 0.0
  %158 = vmatprep.subr.mxu0 0.0
  %159 = vmatpush1.msra.mxu0 0.0
  %160 = vmatprep.subr.mxu0 0.0
  %161 = vmatpush1.msra.mxu0 0.0
  %162 = vmatprep.subr.mxu0 0.0
  %163 = vmatpush1.msra.mxu0 0.0
  %164 = vmatprep.subr.mxu0 0.0
  %165 = vmatpush1.msra.mxu0 0.0
  %166 = vmatprep.subr.mxu0 0.0
  %167 = vmatpush1.msra.mxu0 0.0
  %168 = vmatprep.subr.mxu0 0.0
  %169 = vmatpush1.msra.mxu0 0.0
  %170 = vmatprep.subr.mxu0 0.0
  %171 = vmatpush1.msra.mxu0 0.0
  %172 = vmatprep.subr.mxu0 0.0
  %173 = vmatpush1.msra.mxu0 0.0
  %174 = vmatprep.subr.mxu0 0.0
  %175 = vmatpush1.msra.mxu0 0.0
  %176 = vmatprep.subr.mxu0 0.0
  %177 = vmatpush1.msra.mxu0 0.0
  %178 = vmatprep.subr.mxu0 0.0
  %179 = vmatpush1.msra.mxu0 0.0
  %180 = vmatprep.subr.mxu0 0.0
  %181 = vmatpush1.msra.mxu0 0.0
  %182 = vmatprep.subr.mxu0 0.0
  %183 = vmatpush1.msra.mxu0 0.0
  %184 = vmatprep.subr.mxu0 0.0
  %185 = vmatpush1.msra.mxu0 0.0
  %186 = vmatprep.subr.mxu0 0.0
  %187 = vmatpush1.msra.mxu0 0.0
  %188 = vmatprep.subr.mxu0 0.0
  %189 = vmatpush1.msra.mxu0 0.0
  %190 = vmatprep.subr.mxu0 0.0
  %191 = vmatpush1.msra.mxu0 0.0
  %192 = vmatprep.subr.mxu0 0.0
  %193 = vmatpush1.msra.mxu0 0.0
  %194 = vmatprep.subr.mxu0 0.0
  %195 = vmatpush1.msra.mxu0 0.0
  %196 = vmatprep.subr.mxu0 0.0
  %197 = vmatpush1.msra.mxu0 0.0
  %198 = vmatprep.subr.mxu0 0.0
  %199 = vmatpush1.msra.mxu0 0.0
  %200 = vmatprep.subr.mxu0 0.0
  %201 = vmatpush1.msra.mxu0 0.0
  %202 = vmatprep.subr.mxu0 0.0
  %203 = vmatpush1.msra.mxu0 0.0
  %204 = vmatprep.subr.mxu0 0.0
  %205 = vmatpush1.msra.mxu0 0.0
  %206 = vmatprep.subr.mxu0 0.0
  %207 = vmatpush1.msra.mxu0 0.0
  %208 = vmatprep.subr.mxu0 0.0
  %209 = vmatpush1.msra.mxu0 0.0
  %210 = vmatprep.mubr.f32.mxu0 0.0
  %211 = vmatmul.mubr.f32.gmra.mrb[0].mxu0 %v141
  %v212 = vpop.f32.mrb[0].mxu0
  %v213 = vadd.f32 %v137, %v212
  %v214 = vpop.f32.mrb[0].mxu0
  %215 = vmatprep.mubr.f32.mxu0 0.0
  %216 = vmatmul.mubr.f32.gmra.mrb[0].mxu0 %v144
  %v217 = vpop.f32.mrb[0].mxu0
  %v218 = vadd.f32 %v137, %v217
  %v219 = vpop.f32.mrb[0].mxu0
  %220 = vdwg.mxu0
  %v221 = vld [vmem:[%s4] sm:$0xff]
  %v222 = vld [vmem:[%s4 + $0x8] sm:$0xff]
  %v224 = vsel %vm139, %v213, 0
  %v227 = vsel %vm139, %v218, 0
  %229 = vmatprep.subr.mxu0 0.0
  %230 = vmatpush1.msra.mxu0 %v221
  %231 = vmatprep.subr.mxu0 0.0
  %232 = vmatpush1.msra.mxu0 %v222
  %233 = vmatprep.subr.mxu0 0.0
  %234 = vmatpush1.msra.mxu0 0.0
  %235 = vmatprep.subr.mxu0 0.0
  %236 = vmatpush1.msra.mxu0 0.0
  %237 = vmatprep.subr.mxu0 0.0
  %238 = vmatpush1.msra.mxu0 0.0
  %239 = vmatprep.subr.mxu0 0.0
  %240 = vmatpush1.msra.mxu0 0.0
  %241 = vmatprep.subr.mxu0 0.0
  %242 = vmatpush1.msra.mxu0 0.0
  %243 = vmatprep.subr.mxu0 0.0
  %244 = vmatpush1.msra.mxu0 0.0
  %245 = vmatprep.subr.mxu0 0.0
  %246 = vmatpush1.msra.mxu0 0.0
  %247 = vmatprep.subr.mxu0 0.0
  %248 = vmatpush1.msra.mxu0 0.0
  %249 = vmatprep.subr.mxu0 0.0
  %250 = vmatpush1.msra.mxu0 0.0
  %251 = vmatprep.subr.mxu0 0.0
  %252 = vmatpush1.msra.mxu0 0.0
  %253 = vmatprep.subr.mxu0 0.0
  %254 = vmatpush1.msra.mxu0 0.0
  %255 = vmatprep.subr.mxu0 0.0
  %256 = vmatpush1.msra.mxu0 0.0
  %257 = vmatprep.subr.mxu0 0.0
  %258 = vmatpush1.msra.mxu0 0.0
  %259 = vmatprep.subr.mxu0 0.0
  %260 = vmatpush1.msra.mxu0 0.0
  %261 = vmatprep.subr.mxu0 0.0
  %262 = vmatpush1.msra.mxu0 0.0
  %263 = vmatprep.subr.mxu0 0.0
  %264 = vmatpush1.msra.mxu0 0.0
  %265 = vmatprep.subr.mxu0 0.0
  %266 = vmatpush1.msra.mxu0 0.0
  %267 = vmatprep.subr.mxu0 0.0
  %268 = vmatpush1.msra.mxu0 0.0
  %269 = vmatprep.subr.mxu0 0.0
  %270 = vmatpush1.msra.mxu0 0.0
  %271 = vmatprep.subr.mxu0 0.0
  %272 = vmatpush1.msra.mxu0 0.0
  %273 = vmatprep.subr.mxu0 0.0
  %274 = vmatpush1.msra.mxu0 0.0
  %275 = vmatprep.subr.mxu0 0.0
  %276 = vmatpush1.msra.mxu0 0.0
  %277 = vmatprep.subr.mxu0 0.0
  %278 = vmatpush1.msra.mxu0 0.0
  %279 = vmatprep.subr.mxu0 0.0
  %280 = vmatpush1.msra.mxu0 0.0
  %281 = vmatprep.subr.mxu0 0.0
  %282 = vmatpush1.msra.mxu0 0.0
  %283 = vmatprep.subr.mxu0 0.0
  %284 = vmatpush1.msra.mxu0 0.0
  %285 = vmatprep.subr.mxu0 0.0
  %286 = vmatpush1.msra.mxu0 0.0
  %287 = vmatprep.subr.mxu0 0.0
  %288 = vmatpush1.msra.mxu0 0.0
  %289 = vmatprep.subr.mxu0 0.0
  %290 = vmatpush1.msra.mxu0 0.0
  %291 = vmatprep.subr.mxu0 0.0
  %292 = vmatpush1.msra.mxu0 0.0
  %293 = vmatprep.mubr.f32.mxu0 0.0
  %294 = vmatmul.mubr.f32.gmra.mrb[0].mxu0 %v224
  %v295 = vpop.f32.mrb[0].mxu0
  %v296 = vadd.f32 0.0, %v295
  %v297 = vpop.f32.mrb[0].mxu0
  %298 = vmatprep.mubr.f32.mxu0 0.0
  %299 = vmatmul.mubr.f32.gmra.mrb[0].mxu0 %v227
  %v300 = vpop.f32.mrb[0].mxu0
  %v301 = vadd.f32 0.0, %v300
  %v302 = vpop.f32.mrb[0].mxu0
  %303 = vdwg.mxu0
  %v304 = vld [vmem:[%s5] sm:$0x1]
  %v306 = vlaneseq
  %v307 = vshrl.u32 %v306, 7
  %v308 = vsub.s32 0, %v307
  %v309 = vrot.slane %v304, %v308
  %311 = vmatprep.subr.mxu0 0.0
  %312 = vmatpush1.msra.mxu0 %v296
  %313 = vmatprep.subr.mxu0 0.0
  %314 = vmatpush1.msra.mxu0 %v301
  %315 = vmatprep.subr.mxu0 0.0
  %316 = vmatpush1.msra.mxu0 0.0
  %317 = vmatprep.subr.mxu0 0.0
  %318 = vmatpush1.msra.mxu0 0.0
  %319 = vmatprep.subr.mxu0 0.0
  %320 = vmatpush1.msra.mxu0 0.0
  %321 = vmatprep.subr.mxu0 0.0
  %322 = vmatpush1.msra.mxu0 0.0
  %323 = vmatprep.subr.mxu0 0.0
  %324 = vmatpush1.msra.mxu0 0.0
  %325 = vmatprep.subr.mxu0 0.0
  %326 = vmatpush1.msra.mxu0 0.0
  %327 = vmatprep.subr.mxu0 0.0
  %328 = vmatpush1.msra.mxu0 0.0
  %329 = vmatprep.subr.mxu0 0.0
  %330 = vmatpush1.msra.mxu0 0.0
  %331 = vmatprep.subr.mxu0 0.0
  %332 = vmatpush1.msra.mxu0 0.0
  %333 = vmatprep.subr.mxu0 0.0
  %334 = vmatpush1.msra.mxu0 0.0
  %335 = vmatprep.subr.mxu0 0.0
  %336 = vmatpush1.msra.mxu0 0.0
  %337 = vmatprep.subr.mxu0 0.0
  %338 = vmatpush1.msra.mxu0 0.0
  %339 = vmatprep.subr.mxu0 0.0
  %340 = vmatpush1.msra.mxu0 0.0
  %341 = vmatprep.subr.mxu0 0.0
  %342 = vmatpush1.msra.mxu0 0.0
  %343 = vmatprep.subr.mxu0 0.0
  %344 = vmatpush1.msra.mxu0 0.0
  %345 = vmatprep.subr.mxu0 0.0
  %346 = vmatpush1.msra.mxu0 0.0
  %347 = vmatprep.subr.mxu0 0.0
  %348 = vmatpush1.msra.mxu0 0.0
  %349 = vmatprep.subr.mxu0 0.0
  %350 = vmatpush1.msra.mxu0 0.0
  %351 = vmatprep.subr.mxu0 0.0
  %352 = vmatpush1.msra.mxu0 0.0
  %353 = vmatprep.subr.mxu0 0.0
  %354 = vmatpush1.msra.mxu0 0.0
  %355 = vmatprep.subr.mxu0 0.0
  %356 = vmatpush1.msra.mxu0 0.0
  %357 = vmatprep.subr.mxu0 0.0
  %358 = vmatpush1.msra.mxu0 0.0
  %359 = vmatprep.subr.mxu0 0.0
  %360 = vmatpush1.msra.mxu0 0.0
  %361 = vmatprep.subr.mxu0 0.0
  %362 = vmatpush1.msra.mxu0 0.0
  %363 = vmatprep.subr.mxu0 0.0
  %364 = vmatpush1.msra.mxu0 0.0
  %365 = vmatprep.subr.mxu0 0.0
  %366 = vmatpush1.msra.mxu0 0.0
  %367 = vmatprep.subr.mxu0 0.0
  %368 = vmatpush1.msra.mxu0 0.0
  %369 = vmatprep.subr.mxu0 0.0
  %370 = vmatpush1.msra.mxu0 0.0
  %371 = vmatprep.subr.mxu0 0.0
  %372 = vmatpush1.msra.mxu0 0.0
  %373 = vmatprep.subr.mxu0 0.0
  %374 = vmatpush1.msra.mxu0 0.0
  %375 = vmatprep.mubr.f32.mxu0 0.0
  %376 = vmatmul.mubr.f32.gmra.mrb[0].mxu0 %v141
  %v377 = vpop.f32.mrb[0].mxu0
  %v378 = vadd.f32 %v309, %v377
  %v379 = vpop.f32.mrb[0].mxu0
  %380 = vmatprep.mubr.f32.mxu0 0.0
  %381 = vmatmul.mubr.f32.gmra.mrb[0].mxu0 %v144
  %v382 = vpop.f32.mrb[0].mxu0
  %v383 = vadd.f32 %v309, %v382
  %v384 = vpop.f32.mrb[0].mxu0
  %385 = vdwg.mxu0
  %v386 = vld [vmem:[%s9] sm:$0xff]
  %v387 = vld [vmem:[%s9 + $0x8] sm:$0xff]
  %v388 = vld [vmem:[%s9 + $0x10] sm:$0xff]
  %v389 = vld [vmem:[%s9 + $0x18] sm:$0xff]
  %v390 = vld [vmem:[%s9 + $0x20] sm:$0xff]
  %v391 = vld [vmem:[%s9 + $0x28] sm:$0xff]
  %v393 = vsel %vm139, %v378, 0
  %v396 = vsel %vm139, %v383, 0
  %398 = vmatprep.subr.mxu0 0.0
  %399 = vmatpush1.msra.mxu0 %v386
  %400 = vmatprep.subr.mxu0 0.0
  %401 = vmatpush1.msra.mxu0 %v387
  %402 = vmatprep.subr.mxu0 0.0
  %403 = vmatpush1.msra.mxu0 0.0
  %404 = vmatprep.subr.mxu0 0.0
  %405 = vmatpush1.msra.mxu0 0.0
  %406 = vmatprep.subr.mxu0 0.0
  %407 = vmatpush1.msra.mxu0 0.0
  %408 = vmatprep.subr.mxu0 0.0
  %409 = vmatpush1.msra.mxu0 0.0
  %410 = vmatprep.subr.mxu0 0.0
  %411 = vmatpush1.msra.mxu0 0.0
  %412 = vmatprep.subr.mxu0 0.0
  %413 = vmatpush1.msra.mxu0 0.0
  %414 = vmatprep.subr.mxu0 0.0
  %415 = vmatpush1.msra.mxu0 0.0
  %416 = vmatprep.subr.mxu0 0.0
  %417 = vmatpush1.msra.mxu0 0.0
  %418 = vmatprep.subr.mxu0 0.0
  %419 = vmatpush1.msra.mxu0 0.0
  %420 = vmatprep.subr.mxu0 0.0
  %421 = vmatpush1.msra.mxu0 0.0
  %422 = vmatprep.subr.mxu0 0.0
  %423 = vmatpush1.msra.mxu0 0.0
  %424 = vmatprep.subr.mxu0 0.0
  %425 = vmatpush1.msra.mxu0 0.0
  %426 = vmatprep.subr.mxu0 0.0
  %427 = vmatpush1.msra.mxu0 0.0
  %428 = vmatprep.subr.mxu0 0.0
  %429 = vmatpush1.msra.mxu0 0.0
  %430 = vmatprep.subr.mxu0 0.0
  %431 = vmatpush1.msra.mxu0 0.0
  %432 = vmatprep.subr.mxu0 0.0
  %433 = vmatpush1.msra.mxu0 0.0
  %434 = vmatprep.subr.mxu0 0.0
  %435 = vmatpush1.msra.mxu0 0.0
  %436 = vmatprep.subr.mxu0 0.0
  %437 = vmatpush1.msra.mxu0 0.0
  %438 = vmatprep.subr.mxu0 0.0
  %439 = vmatpush1.msra.mxu0 0.0
  %440 = vmatprep.subr.mxu0 0.0
  %441 = vmatpush1.msra.mxu0 0.0
  %442 = vmatprep.subr.mxu0 0.0
  %443 = vmatpush1.msra.mxu0 0.0
  %444 = vmatprep.subr.mxu0 0.0
  %445 = vmatpush1.msra.mxu0 0.0
  %446 = vmatprep.subr.mxu0 0.0
  %447 = vmatpush1.msra.mxu0 0.0
  %448 = vmatprep.subr.mxu0 0.0
  %449 = vmatpush1.msra.mxu0 0.0
  %450 = vmatprep.subr.mxu0 0.0
  %451 = vmatpush1.msra.mxu0 0.0
  %452 = vmatprep.subr.mxu0 0.0
  %453 = vmatpush1.msra.mxu0 0.0
  %454 = vmatprep.subr.mxu0 0.0
  %455 = vmatpush1.msra.mxu0 0.0
  %456 = vmatprep.subr.mxu0 0.0
  %457 = vmatpush1.msra.mxu0 0.0
  %458 = vmatprep.subr.mxu0 0.0
  %459 = vmatpush1.msra.mxu0 0.0
  %460 = vmatprep.subr.mxu0 0.0
  %461 = vmatpush1.msra.mxu0 0.0
  %462 = vmatprep.mubr.f32.mxu0 0.0
  %463 = vmatmul.mubr.f32.gmra.mrb[0].mxu0 %v393
  %v464 = vpop.f32.mrb[0].mxu0
  %v465 = vadd.f32 0.0, %v464
  %v466 = vpop.f32.mrb[0].mxu0
  %467 = vmatprep.mubr.f32.mxu0 0.0
  %468 = vmatmul.mubr.f32.gmra.mrb[0].mxu0 %v396
  %v469 = vpop.f32.mrb[0].mxu0
  %v470 = vadd.f32 0.0, %v469
  %v471 = vpop.f32.mrb[0].mxu0
  %472 = vdwg.mxu0
  %473 = vmatprep.subr.mxu0 0.0
  %474 = vmatpush1.msra.mxu0 %v388
  %475 = vmatprep.subr.mxu0 0.0
  %476 = vmatpush1.msra.mxu0 %v389
  %477 = vmatprep.subr.mxu0 0.0
  %478 = vmatpush1.msra.mxu0 0.0
  %479 = vmatprep.subr.mxu0 0.0
  %480 = vmatpush1.msra.mxu0 0.0
  %481 = vmatprep.subr.mxu0 0.0
  %482 = vmatpush1.msra.mxu0 0.0
  %483 = vmatprep.subr.mxu0 0.0
  %484 = vmatpush1.msra.mxu0 0.0
  %485 = vmatprep.subr.mxu0 0.0
  %486 = vmatpush1.msra.mxu0 0.0
  %487 = vmatprep.subr.mxu0 0.0
  %488 = vmatpush1.msra.mxu0 0.0
  %489 = vmatprep.subr.mxu0 0.0
  %490 = vmatpush1.msra.mxu0 0.0
  %491 = vmatprep.subr.mxu0 0.0
  %492 = vmatpush1.msra.mxu0 0.0
  %493 = vmatprep.subr.mxu0 0.0
  %494 = vmatpush1.msra.mxu0 0.0
  %495 = vmatprep.subr.mxu0 0.0
  %496 = vmatpush1.msra.mxu0 0.0
  %497 = vmatprep.subr.mxu0 0.0
  %498 = vmatpush1.msra.mxu0 0.0
  %499 = vmatprep.subr.mxu0 0.0
  %500 = vmatpush1.msra.mxu0 0.0
  %501 = vmatprep.subr.mxu0 0.0
  %502 = vmatpush1.msra.mxu0 0.0
  %503 = vmatprep.subr.mxu0 0.0
  %504 = vmatpush1.msra.mxu0 0.0
  %505 = vmatprep.subr.mxu0 0.0
  %506 = vmatpush1.msra.mxu0 0.0
  %507 = vmatprep.subr.mxu0 0.0
  %508 = vmatpush1.msra.mxu0 0.0
  %509 = vmatprep.subr.mxu0 0.0
  %510 = vmatpush1.msra.mxu0 0.0
  %511 = vmatprep.subr.mxu0 0.0
  %512 = vmatpush1.msra.mxu0 0.0
  %513 = vmatprep.subr.mxu0 0.0
  %514 = vmatpush1.msra.mxu0 0.0
  %515 = vmatprep.subr.mxu0 0.0
  %516 = vmatpush1.msra.mxu0 0.0
  %517 = vmatprep.subr.mxu0 0.0
  %518 = vmatpush1.msra.mxu0 0.0
  %519 = vmatprep.subr.mxu0 0.0
  %520 = vmatpush1.msra.mxu0 0.0
  %521 = vmatprep.subr.mxu0 0.0
  %522 = vmatpush1.msra.mxu0 0.0
  %523 = vmatprep.subr.mxu0 0.0
  %524 = vmatpush1.msra.mxu0 0.0
  %525 = vmatprep.subr.mxu0 0.0
  %526 = vmatpush1.msra.mxu0 0.0
  %527 = vmatprep.subr.mxu0 0.0
  %528 = vmatpush1.msra.mxu0 0.0
  %529 = vmatprep.subr.mxu0 0.0
  %530 = vmatpush1.msra.mxu0 0.0
  %531 = vmatprep.subr.mxu0 0.0
  %532 = vmatpush1.msra.mxu0 0.0
  %533 = vmatprep.subr.mxu0 0.0
  %534 = vmatpush1.msra.mxu0 0.0
  %535 = vmatprep.subr.mxu0 0.0
  %536 = vmatpush1.msra.mxu0 0.0
  %537 = vmatprep.mubr.f32.mxu0 0.0
  %538 = vmatmul.mubr.f32.gmra.mrb[0].mxu0 %v393
  %v539 = vpop.f32.mrb[0].mxu0
  %v540 = vadd.f32 0.0, %v539
  %v541 = vpop.f32.mrb[0].mxu0
  %542 = vmatprep.mubr.f32.mxu0 0.0
  %543 = vmatmul.mubr.f32.gmra.mrb[0].mxu0 %v396
  %v544 = vpop.f32.mrb[0].mxu0
  %v545 = vadd.f32 0.0, %v544
  %v546 = vpop.f32.mrb[0].mxu0
  %547 = vdwg.mxu0
  %548 = vmatprep.subr.mxu0 0.0
  %549 = vmatpush1.msra.mxu0 %v390
  %550 = vmatprep.subr.mxu0 0.0
  %551 = vmatpush1.msra.mxu0 %v391
  %552 = vmatprep.subr.mxu0 0.0
  %553 = vmatpush1.msra.mxu0 0.0
  %554 = vmatprep.subr.mxu0 0.0
  %555 = vmatpush1.msra.mxu0 0.0
  %556 = vmatprep.subr.mxu0 0.0
  %557 = vmatpush1.msra.mxu0 0.0
  %558 = vmatprep.subr.mxu0 0.0
  %559 = vmatpush1.msra.mxu0 0.0
  %560 = vmatprep.subr.mxu0 0.0
  %561 = vmatpush1.msra.mxu0 0.0
  %562 = vmatprep.subr.mxu0 0.0
  %563 = vmatpush1.msra.mxu0 0.0
  %564 = vmatprep.subr.mxu0 0.0
  %565 = vmatpush1.msra.mxu0 0.0
  %566 = vmatprep.subr.mxu0 0.0
  %567 = vmatpush1.msra.mxu0 0.0
  %568 = vmatprep.subr.mxu0 0.0
  %569 = vmatpush1.msra.mxu0 0.0
  %570 = vmatprep.subr.mxu0 0.0
  %571 = vmatpush1.msra.mxu0 0.0
  %572 = vmatprep.subr.mxu0 0.0
  %573 = vmatpush1.msra.mxu0 0.0
  %574 = vmatprep.subr.mxu0 0.0
  %575 = vmatpush1.msra.mxu0 0.0
  %576 = vmatprep.subr.mxu0 0.0
  %577 = vmatpush1.msra.mxu0 0.0
  %578 = vmatprep.subr.mxu0 0.0
  %579 = vmatpush1.msra.mxu0 0.0
  %580 = vmatprep.subr.mxu0 0.0
  %581 = vmatpush1.msra.mxu0 0.0
  %582 = vmatprep.subr.mxu0 0.0
  %583 = vmatpush1.msra.mxu0 0.0
  %584 = vmatprep.subr.mxu0 0.0
  %585 = vmatpush1.msra.mxu0 0.0
  %586 = vmatprep.subr.mxu0 0.0
  %587 = vmatpush1.msra.mxu0 0.0
  %588 = vmatprep.subr.mxu0 0.0
  %589 = vmatpush1.msra.mxu0 0.0
  %590 = vmatprep.subr.mxu0 0.0
  %591 = vmatpush1.msra.mxu0 0.0
  %592 = vmatprep.subr.mxu0 0.0
  %593 = vmatpush1.msra.mxu0 0.0
  %594 = vmatprep.subr.mxu0 0.0
  %595 = vmatpush1.msra.mxu0 0.0
  %596 = vmatprep.subr.mxu0 0.0
  %597 = vmatpush1.msra.mxu0 0.0
  %598 = vmatprep.subr.mxu0 0.0
  %599 = vmatpush1.msra.mxu0 0.0
  %600 = vmatprep.subr.mxu0 0.0
  %601 = vmatpush1.msra.mxu0 0.0
  %602 = vmatprep.subr.mxu0 0.0
  %603 = vmatpush1.msra.mxu0 0.0
  %604 = vmatprep.subr.mxu0 0.0
  %605 = vmatpush1.msra.mxu0 0.0
  %606 = vmatprep.subr.mxu0 0.0
  %607 = vmatpush1.msra.mxu0 0.0
  %608 = vmatprep.subr.mxu0 0.0
  %609 = vmatpush1.msra.mxu0 0.0
  %610 = vmatprep.subr.mxu0 0.0
  %611 = vmatpush1.msra.mxu0 0.0
  %612 = vmatprep.mubr.f32.mxu0 0.0
  %613 = vmatmul.mubr.f32.gmra.mrb[0].mxu0 %v393
  %v614 = vpop.f32.mrb[0].mxu0
  %v615 = vadd.f32 0.0, %v614
  %v616 = vpop.f32.mrb[0].mxu0
  %617 = vmatprep.mubr.f32.mxu0 0.0
  %618 = vmatmul.mubr.f32.gmra.mrb[0].mxu0 %v396
  %v619 = vpop.f32.mrb[0].mxu0
  %v620 = vadd.f32 0.0, %v619
  %v621 = vpop.f32.mrb[0].mxu0
  %622 = vdwg.mxu0
  %v623 = vld [vmem:[%s6] sm:$0xff]
  %v624 = vld [vmem:[%s6 + $0x8] sm:$0xff]
  %v625 = vld [vmem:[%s6 + $0x10] sm:$0xff]
  %v626 = vld [vmem:[%s6 + $0x18] sm:$0xff]
  %v627 = vld [vmem:[%s7] sm:$0xff]
  %v628 = vld [vmem:[%s7 + $0x8] sm:$0xff]
  %v629 = vld [vmem:[%s7 + $0x10] sm:$0xff]
  %v630 = vld [vmem:[%s7 + $0x18] sm:$0xff]
  %v632 = vsel %vm139, %v627, 0
  %v635 = vsel %vm139, %v628, 0
  %v638 = vsel %vm139, %v629, 0
  %v641 = vsel %vm139, %v630, 0
  %643 = vmatprep.subr.mxu0 0.0
  %644 = vmatpush1.msra.mxu0 %v540
  %645 = vmatprep.subr.mxu0 0.0
  %646 = vmatpush1.msra.mxu0 %v545
  %647 = vmatprep.subr.mxu0 0.0
  %648 = vmatpush1.msra.mxu0 0.0
  %649 = vmatprep.subr.mxu0 0.0
  %650 = vmatpush1.msra.mxu0 0.0
  %651 = vmatprep.subr.mxu0 0.0
  %652 = vmatpush1.msra.mxu0 0.0
  %653 = vmatprep.subr.mxu0 0.0
  %654 = vmatpush1.msra.mxu0 0.0
  %655 = vmatprep.subr.mxu0 0.0
  %656 = vmatpush1.msra.mxu0 0.0
  %657 = vmatprep.subr.mxu0 0.0
  %658 = vmatpush1.msra.mxu0 0.0
  %659 = vmatprep.subr.mxu0 0.0
  %660 = vmatpush1.msra.mxu0 0.0
  %661 = vmatprep.subr.mxu0 0.0
  %662 = vmatpush1.msra.mxu0 0.0
  %663 = vmatprep.subr.mxu0 0.0
  %664 = vmatpush1.msra.mxu0 0.0
  %665 = vmatprep.subr.mxu0 0.0
  %666 = vmatpush1.msra.mxu0 0.0
  %667 = vmatprep.subr.mxu0 0.0
  %668 = vmatpush1.msra.mxu0 0.0
  %669 = vmatprep.subr.mxu0 0.0
  %670 = vmatpush1.msra.mxu0 0.0
  %671 = vmatprep.subr.mxu0 0.0
  %672 = vmatpush1.msra.mxu0 0.0
  %673 = vmatprep.subr.mxu0 0.0
  %674 = vmatpush1.msra.mxu0 0.0
  %675 = vmatprep.subr.mxu0 0.0
  %676 = vmatpush1.msra.mxu0 0.0
  %677 = vmatprep.subr.mxu0 0.0
  %678 = vmatpush1.msra.mxu0 0.0
  %679 = vmatprep.subr.mxu0 0.0
  %680 = vmatpush1.msra.mxu0 0.0
  %681 = vmatprep.subr.mxu0 0.0
  %682 = vmatpush1.msra.mxu0 0.0
  %683 = vmatprep.subr.mxu0 0.0
  %684 = vmatpush1.msra.mxu0 0.0
  %685 = vmatprep.subr.mxu0 0.0
  %686 = vmatpush1.msra.mxu0 0.0
  %687 = vmatprep.subr.mxu0 0.0
  %688 = vmatpush1.msra.mxu0 0.0
  %689 = vmatprep.subr.mxu0 0.0
  %690 = vmatpush1.msra.mxu0 0.0
  %691 = vmatprep.subr.mxu0 0.0
  %692 = vmatpush1.msra.mxu0 0.0
  %693 = vmatprep.subr.mxu0 0.0
  %694 = vmatpush1.msra.mxu0 0.0
  %695 = vmatprep.subr.mxu0 0.0
  %696 = vmatpush1.msra.mxu0 0.0
  %697 = vmatprep.subr.mxu0 0.0
  %698 = vmatpush1.msra.mxu0 0.0
  %699 = vmatprep.subr.mxu0 0.0
  %700 = vmatpush1.msra.mxu0 0.0
  %701 = vmatprep.subr.mxu0 0.0
  %702 = vmatpush1.msra.mxu0 0.0
  %703 = vmatprep.subr.mxu0 0.0
  %704 = vmatpush1.msra.mxu0 0.0
  %705 = vmatprep.subr.mxu0 0.0
  %706 = vmatpush1.msra.mxu0 0.0
  %707 = vmatprep.mubr.f32.mxu0 0.0
  %708 = vmatmul.mubr.f32.gmra.mrb[0].mxu0 %v632
  %v709 = vpop.f32.mrb[0].mxu0
  %v710 = vadd.f32 0.0, %v709
  %v711 = vpop.f32.mrb[0].mxu0
  %712 = vmatprep.mubr.f32.mxu0 0.0
  %713 = vmatmul.mubr.f32.gmra.mrb[0].mxu0 %v635
  %v714 = vpop.f32.mrb[0].mxu0
  %v715 = vadd.f32 0.0, %v714
  %v716 = vpop.f32.mrb[0].mxu0
  %717 = vmatprep.mubr.f32.mxu0 0.0
  %718 = vmatmul.mubr.f32.gmra.mrb[0].mxu0 %v638
  %v719 = vpop.f32.mrb[0].mxu0
  %v720 = vadd.f32 0.0, %v719
  %v721 = vpop.f32.mrb[0].mxu0
  %722 = vmatprep.mubr.f32.mxu0 0.0
  %723 = vmatmul.mubr.f32.gmra.mrb[0].mxu0 %v641
  %v724 = vpop.f32.mrb[0].mxu0
  %v725 = vadd.f32 0.0, %v724
  %v726 = vpop.f32.mrb[0].mxu0
  %727 = vdwg.mxu0
  %v729 = vsel %vm139, %v623, 0
  %v732 = vsel %vm139, %v624, 0
  %v735 = vsel %vm139, %v625, 0
  %v738 = vsel %vm139, %v626, 0
  %740 = vmatprep.subr.mxu0 0.0
  %741 = vmatpush1.msra.mxu0 %v465
  %742 = vmatprep.subr.mxu0 0.0
  %743 = vmatpush1.msra.mxu0 %v470
  %744 = vmatprep.subr.mxu0 0.0
  %745 = vmatpush1.msra.mxu0 0.0
  %746 = vmatprep.subr.mxu0 0.0
  %747 = vmatpush1.msra.mxu0 0.0
  %748 = vmatprep.subr.mxu0 0.0
  %749 = vmatpush1.msra.mxu0 0.0
  %750 = vmatprep.subr.mxu0 0.0
  %751 = vmatpush1.msra.mxu0 0.0
  %752 = vmatprep.subr.mxu0 0.0
  %753 = vmatpush1.msra.mxu0 0.0
  %754 = vmatprep.subr.mxu0 0.0
  %755 = vmatpush1.msra.mxu0 0.0
  %756 = vmatprep.subr.mxu0 0.0
  %757 = vmatpush1.msra.mxu0 0.0
  %758 = vmatprep.subr.mxu0 0.0
  %759 = vmatpush1.msra.mxu0 0.0
  %760 = vmatprep.subr.mxu0 0.0
  %761 = vmatpush1.msra.mxu0 0.0
  %762 = vmatprep.subr.mxu0 0.0
  %763 = vmatpush1.msra.mxu0 0.0
  %764 = vmatprep.subr.mxu0 0.0
  %765 = vmatpush1.msra.mxu0 0.0
  %766 = vmatprep.subr.mxu0 0.0
  %767 = vmatpush1.msra.mxu0 0.0
  %768 = vmatprep.subr.mxu0 0.0
  %769 = vmatpush1.msra.mxu0 0.0
  %770 = vmatprep.subr.mxu0 0.0
  %771 = vmatpush1.msra.mxu0 0.0
  %772 = vmatprep.subr.mxu0 0.0
  %773 = vmatpush1.msra.mxu0 0.0
  %774 = vmatprep.subr.mxu0 0.0
  %775 = vmatpush1.msra.mxu0 0.0
  %776 = vmatprep.subr.mxu0 0.0
  %777 = vmatpush1.msra.mxu0 0.0
  %778 = vmatprep.subr.mxu0 0.0
  %779 = vmatpush1.msra.mxu0 0.0
  %780 = vmatprep.subr.mxu0 0.0
  %781 = vmatpush1.msra.mxu0 0.0
  %782 = vmatprep.subr.mxu0 0.0
  %783 = vmatpush1.msra.mxu0 0.0
  %784 = vmatprep.subr.mxu0 0.0
  %785 = vmatpush1.msra.mxu0 0.0
  %786 = vmatprep.subr.mxu0 0.0
  %787 = vmatpush1.msra.mxu0 0.0
  %788 = vmatprep.subr.mxu0 0.0
  %789 = vmatpush1.msra.mxu0 0.0
  %790 = vmatprep.subr.mxu0 0.0
  %791 = vmatpush1.msra.mxu0 0.0
  %792 = vmatprep.subr.mxu0 0.0
  %793 = vmatpush1.msra.mxu0 0.0
  %794 = vmatprep.subr.mxu0 0.0
  %795 = vmatpush1.msra.mxu0 0.0
  %796 = vmatprep.subr.mxu0 0.0
  %797 = vmatpush1.msra.mxu0 0.0
  %798 = vmatprep.subr.mxu0 0.0
  %799 = vmatpush1.msra.mxu0 0.0
  %800 = vmatprep.subr.mxu0 0.0
  %801 = vmatpush1.msra.mxu0 0.0
  %802 = vmatprep.subr.mxu0 0.0
  %803 = vmatpush1.msra.mxu0 0.0
  %804 = vmatprep.mubr.f32.mxu0 0.0
  %805 = vmatmul.mubr.f32.gmra.mrb[0].mxu0 %v729
  %v806 = vpop.f32.mrb[0].mxu0
  %v807 = vadd.f32 %v710, %v806
  %v808 = vpop.f32.mrb[0].mxu0
  %809 = vmatprep.mubr.f32.mxu0 0.0
  %810 = vmatmul.mubr.f32.gmra.mrb[0].mxu0 %v732
  %v811 = vpop.f32.mrb[0].mxu0
  %v812 = vadd.f32 %v715, %v811
  %v813 = vpop.f32.mrb[0].mxu0
  %814 = vmatprep.mubr.f32.mxu0 0.0
  %815 = vmatmul.mubr.f32.gmra.mrb[0].mxu0 %v735
  %v816 = vpop.f32.mrb[0].mxu0
  %v817 = vadd.f32 %v720, %v816
  %v818 = vpop.f32.mrb[0].mxu0
  %819 = vmatprep.mubr.f32.mxu0 0.0
  %820 = vmatmul.mubr.f32.gmra.mrb[0].mxu0 %v738
  %v821 = vpop.f32.mrb[0].mxu0
  %v822 = vadd.f32 %v725, %v821
  %v823 = vpop.f32.mrb[0].mxu0
  %824 = vdwg.mxu0
  %v825 = vld [vmem:[%s8] sm:$0xff]
  %v826 = vld [vmem:[%s8 + $0x8] sm:$0xff]
  %v827 = vld [vmem:[%s8 + $0x10] sm:$0xff]
  %v828 = vld [vmem:[%s8 + $0x18] sm:$0xff]
  %v830 = vsel %vm139, %v825, 0
  %v833 = vsel %vm139, %v826, 0
  %v836 = vsel %vm139, %v827, 0
  %v839 = vsel %vm139, %v828, 0
  %841 = vmatprep.subr.mxu0 0.0
  %842 = vmatpush1.msra.mxu0 %v615
  %843 = vmatprep.subr.mxu0 0.0
  %844 = vmatpush1.msra.mxu0 %v620
  %845 = vmatprep.subr.mxu0 0.0
  %846 = vmatpush1.msra.mxu0 0.0
  %847 = vmatprep.subr.mxu0 0.0
  %848 = vmatpush1.msra.mxu0 0.0
  %849 = vmatprep.subr.mxu0 0.0
  %850 = vmatpush1.msra.mxu0 0.0
  %851 = vmatprep.subr.mxu0 0.0
  %852 = vmatpush1.msra.mxu0 0.0
  %853 = vmatprep.subr.mxu0 0.0
  %854 = vmatpush1.msra.mxu0 0.0
  %855 = vmatprep.subr.mxu0 0.0
  %856 = vmatpush1.msra.mxu0 0.0
  %857 = vmatprep.subr.mxu0 0.0
  %858 = vmatpush1.msra.mxu0 0.0
  %859 = vmatprep.subr.mxu0 0.0
  %860 = vmatpush1.msra.mxu0 0.0
  %861 = vmatprep.subr.mxu0 0.0
  %862 = vmatpush1.msra.mxu0 0.0
  %863 = vmatprep.subr.mxu0 0.0
  %864 = vmatpush1.msra.mxu0 0.0
  %865 = vmatprep.subr.mxu0 0.0
  %866 = vmatpush1.msra.mxu0 0.0
  %867 = vmatprep.subr.mxu0 0.0
  %868 = vmatpush1.msra.mxu0 0.0
  %869 = vmatprep.subr.mxu0 0.0
  %870 = vmatpush1.msra.mxu0 0.0
  %871 = vmatprep.subr.mxu0 0.0
  %872 = vmatpush1.msra.mxu0 0.0
  %873 = vmatprep.subr.mxu0 0.0
  %874 = vmatpush1.msra.mxu0 0.0
  %875 = vmatprep.subr.mxu0 0.0
  %876 = vmatpush1.msra.mxu0 0.0
  %877 = vmatprep.subr.mxu0 0.0
  %878 = vmatpush1.msra.mxu0 0.0
  %879 = vmatprep.subr.mxu0 0.0
  %880 = vmatpush1.msra.mxu0 0.0
  %881 = vmatprep.subr.mxu0 0.0
  %882 = vmatpush1.msra.mxu0 0.0
  %883 = vmatprep.subr.mxu0 0.0
  %884 = vmatpush1.msra.mxu0 0.0
  %885 = vmatprep.subr.mxu0 0.0
  %886 = vmatpush1.msra.mxu0 0.0
  %887 = vmatprep.subr.mxu0 0.0
  %888 = vmatpush1.msra.mxu0 0.0
  %889 = vmatprep.subr.mxu0 0.0
  %890 = vmatpush1.msra.mxu0 0.0
  %891 = vmatprep.subr.mxu0 0.0
  %892 = vmatpush1.msra.mxu0 0.0
  %893 = vmatprep.subr.mxu0 0.0
  %894 = vmatpush1.msra.mxu0 0.0
  %895 = vmatprep.subr.mxu0 0.0
  %896 = vmatpush1.msra.mxu0 0.0
  %897 = vmatprep.subr.mxu0 0.0
  %898 = vmatpush1.msra.mxu0 0.0
  %899 = vmatprep.subr.mxu0 0.0
  %900 = vmatpush1.msra.mxu0 0.0
  %901 = vmatprep.subr.mxu0 0.0
  %902 = vmatpush1.msra.mxu0 0.0
  %903 = vmatprep.subr.mxu0 0.0
  %904 = vmatpush1.msra.mxu0 0.0
  %905 = vmatprep.mubr.f32.mxu0 0.0
  %906 = vmatmul.mubr.f32.gmra.mrb[0].mxu0 %v830
  %v907 = vpop.f32.mrb[0].mxu0
  %v908 = vadd.f32 0.0, %v907
  %v909 = vpop.f32.mrb[0].mxu0
  %910 = vmatprep.mubr.f32.mxu0 0.0
  %911 = vmatmul.mubr.f32.gmra.mrb[0].mxu0 %v833
  %v912 = vpop.f32.mrb[0].mxu0
  %v913 = vadd.f32 0.0, %v912
  %v914 = vpop.f32.mrb[0].mxu0
  %915 = vmatprep.mubr.f32.mxu0 0.0
  %916 = vmatmul.mubr.f32.gmra.mrb[0].mxu0 %v836
  %v917 = vpop.f32.mrb[0].mxu0
  %v918 = vadd.f32 0.0, %v917
  %v919 = vpop.f32.mrb[0].mxu0
  %920 = vmatprep.mubr.f32.mxu0 0.0
  %921 = vmatmul.mubr.f32.gmra.mrb[0].mxu0 %v839
  %v922 = vpop.f32.mrb[0].mxu0
  %v923 = vadd.f32 0.0, %v922
  %v924 = vpop.f32.mrb[0].mxu0
  %925 = vdwg.mxu0
  %v926 = vadd.f32 %v807, %v908
  %v927 = vadd.f32 %v812, %v913
  %v928 = vadd.f32 %v817, %v918
  %v929 = vadd.f32 %v822, %v923
  %v930 = vld [vmem:[%s10] sm:$0x1]
  %v932 = vlaneseq
  %v933 = vshrl.u32 %v932, 7
  %v934 = vsub.s32 0, %v933
  %v935 = vrot.slane %v930, %v934
  %v937 = vadd.f32 %v926, %v935
  %v938 = vadd.f32 %v927, %v935
  %v939 = vadd.f32 %v928, %v935
  %v940 = vadd.f32 %v929, %v935
  %v941 = vmax.f32 %v937, 0.0
  %v942 = vmax.f32 %v938, 0.0
  %v943 = vmax.f32 %v939, 0.0
  %v944 = vmax.f32 %v940, 0.0
  %v945 = vld [vmem:[%s11] sm:$0x1]
  %v947 = vlaneseq
  %v948 = vshrl.u32 %v947, 7
  %v949 = vsub.s32 0, %v948
  %v950 = vrot.slane %v945, %v949
  %v952 = vmul.f32 %v941, %v950
  %v953 = vmul.f32 %v942, %v950
  %v954 = vmul.f32 %v943, %v950
  %v955 = vmul.f32 %v944, %v950
  %vm956 = vcmask 261120
  %v957 = vsel %vm956, %v952, 0.0
  %958 = vadd.xlane.f32.xlu0 %v957
  %v959 = vpop.xlane.xlu0 %958
  %v960 = vsel %vm956, %v953, 0.0
  %961 = vadd.xlane.f32.xlu0 %v960
  %v962 = vpop.xlane.xlu0 %961
  %v963 = vsel %vm956, %v954, 0.0
  %964 = vadd.xlane.f32.xlu0 %v963
  %v965 = vpop.xlane.xlu0 %964
  %v966 = vsel %vm956, %v955, 0.0
  %967 = vadd.xlane.f32.xlu0 %v966
  %v968 = vpop.xlane.xlu0 %967
  %s969 = sld [smem:[#allocation2]]
  %v970 = vstv %s969
  %v971 = vadd.f32 %v959, %v970
  %v972 = vadd.f32 %v962, %v970
  %v973 = vadd.f32 %v965, %v970
  %v974 = vadd.f32 %v968, %v970
  %vm975 = vcmask 7168
  %976 = vst.msk [vmem:[%s13] sm:$0xff] %vm975, %v971
  %977 = vst.msk [vmem:[%s13 + $0x8] sm:$0xff] %vm975, %v972
  %978 = vst.msk [vmem:[%s13 + $0x10] sm:$0xff] %vm975, %v973
  %979 = vst.msk [vmem:[%s13 + $0x18] sm:$0xff] %vm975, %v974
  // Predicated region
  $region54: #{tpu_custom_call.1} parent=0 // pred_check
    _
  $region55: #{tpu_custom_call.1} parent=0 // pred_check_branch
    %981 = sbr.rel (0) target = $region57
  $region56: #{tpu_custom_call.1} parent=0 // pred_region
    _
  $region57: #{tpu_custom_call.1} parent=0 // pred_fallthru
    _
  // Predicated region
  $region58: #{tpu_custom_call.1} parent=0 // pred_check
    _
  $region59: #{tpu_custom_call.1} parent=0 // pred_check_branch
    %983 = sbr.rel (0) target = $region61
  $region60: #{tpu_custom_call.1} parent=0 // pred_region
    _
  $region61: #{tpu_custom_call.1} parent=0 // pred_fallthru
    _

</llo_original>
